<compile_context>
chip_gen: v5e
topology: v5e:2x2
jax: 0.10.0
libtpu: 0.0.40
codegen_flags: <defaults>
</compile_context>

<pallas_src>
import functools

import jax
import jax.numpy as jnp
import numpy as np
from jax.experimental import pallas as pl
from jax.experimental.pallas import tpu as pltpu


# ----------------------------------------------------------------------------
# Fused Pallas kernel (single grid point, everything resident in VMEM).
# ----------------------------------------------------------------------------
def _fused_forward_kernel(a_ref, x_ref, mask_ref, p_ref,
                          w1_ref, b1_ref, w2_ref, b2_ref,
                          wh_ref, bh_ref, wf_ref, bf_ref,
                          xa_ref, xc_ref, *, units):
    f32 = jnp.float32
    bf16 = jnp.bfloat16

    a = a_ref[...]                                    # [N, N] bf16

    def sage(h_bf, w_ref, b_ref):
        # mean-aggregate once, then one merged (lin_l | lin_r) matmul:
        #   [A@h | h] @ vstack(W_l, W_r) + b     (f32 accumulation)
        agg = jnp.dot(a, h_bf, preferred_element_type=f32).astype(bf16)
        z = jnp.dot(jnp.concatenate([agg, h_bf], axis=-1), w_ref[...],
                    preferred_element_type=f32)
        return z + b_ref[...]

    # ---- common trunk (tanh kept in f32) -----------------------------------
    h = jnp.tanh(sage(x_ref[...], w1_ref, b1_ref)).astype(bf16)   # [N, units]
    h = jnp.tanh(sage(h, w2_ref, b2_ref)).astype(bf16)            # [N, units]

    # ---- actor + critic heads: shared A@h, fused [critic | actor] matmul ---
    heads = sage(h, wh_ref, bh_ref)                   # [N, units + 1] f32
    x_crit = heads[:, :units]                         # [N, units]
    x_act = heads[:, units:units + 1]                 # [N, 1]

    # actor: mask do_not_flip rows with -inf, log_softmax over nodes (dim 0)
    xa = jnp.where(mask_ref[...] > 0.0, -jnp.inf, x_act)
    m = jnp.max(xa, axis=0, keepdims=True)
    lse = jnp.log(jnp.sum(jnp.exp(xa - m), axis=0, keepdims=True)) + m
    xa_ref[...] = xa - lse

    # critic: final Linear -> global mean pool -> tanh   (tiny, f32)
    hc = jnp.dot(x_crit, wf_ref[...], preferred_element_type=f32) + bf_ref[...]
    xc_ref[...] = jnp.tanh(jnp.dot(p_ref[...], hc, preferred_element_type=f32))


def _vmem_specs(n):
    return [pl.BlockSpec(memory_space=pltpu.MemorySpace.VMEM) for _ in range(n)]


# ----------------------------------------------------------------------------
# Plain-JAX glue: dense adjacency / pooling construction, weight packing.
# ----------------------------------------------------------------------------
def dense_mean_adj(edge_index, n):
    src, dst = edge_index[0], edge_index[1]
    a = jnp.zeros((n, n), jnp.float32).at[dst, src].add(1.0)
    deg = jnp.maximum(a.sum(axis=1, keepdims=True), 1.0)
    return a / deg


def pool_matrix(batch, num_graphs, n):
    p = jnp.zeros((num_graphs, n), jnp.float32).at[batch, jnp.arange(n)].set(1.0)
    cnt = jnp.maximum(p.sum(axis=1, keepdims=True), 1.0)
    return p / cnt


def init_params(key, units):
    ks = jax.random.split(key, 12)
    s = 0.1

    def w(k, i, o):
        return jax.random.normal(k, (i, o), jnp.float32) * s

    return dict(
        first_wl=w(ks[0], 5, units), first_wr=w(ks[1], 5, units),
        first_bl=w(ks[2], 1, units),
        common_wl=w(ks[3], units, units), common_wr=w(ks[4], units, units),
        common_bl=w(ks[5], 1, units),
        actor_wl=w(ks[6], units, 1), actor_wr=w(ks[7], units, 1),
        actor_bl=w(ks[8], 1, 1),
        critic_wl=w(ks[9], units, units), critic_wr=w(ks[10], units, units),
        critic_bl=jnp.zeros((1, units), jnp.float32),
        final_w=w(ks[11], units, 1),
        final_b=jnp.zeros((1, 1), jnp.float32),
    )


def model_forward(params, x, edge_index, batch, num_graphs):
    n = x.shape[0]
    units = params["first_wl"].shape[1]
    bf16 = jnp.bfloat16

    adj = dense_mean_adj(edge_index, n).astype(bf16)
    pmat = pool_matrix(batch, num_graphs, n)
    mask = (x[:, 2:3] != 0.0).astype(jnp.float32)     # do_not_flip

    # pad first-layer input channels 5 -> 8 (zero cols + zero weight rows)
    in_pad = 8
    x_pad = jnp.pad(x, ((0, 0), (0, in_pad - x.shape[1]))).astype(bf16)

    def pad_rows(wm):
        return jnp.pad(wm, ((0, in_pad - wm.shape[0]), (0, 0)))

    # merged (lin_l ; lin_r) weights per layer
    w1 = jnp.concatenate([pad_rows(params["first_wl"]),
                          pad_rows(params["first_wr"])], axis=0).astype(bf16)
    b1 = params["first_bl"]
    w2 = jnp.concatenate([params["common_wl"],
                          params["common_wr"]], axis=0).astype(bf16)
    b2 = params["common_bl"]
    # fused head weights: columns = [critic(units) | actor(1)]
    wh = jnp.concatenate([
        jnp.concatenate([params["critic_wl"], params["actor_wl"]], axis=1),
        jnp.concatenate([params["critic_wr"], params["actor_wr"]], axis=1),
    ], axis=0).astype(bf16)
    bh = jnp.concatenate([params["critic_bl"], params["actor_bl"]], axis=1)
    wf = params["final_w"]
    b_final = params["final_b"]

    kernel = functools.partial(_fused_forward_kernel, units=units)
    xa, xc = pl.pallas_call(
        kernel,
        out_shape=(jax.ShapeDtypeStruct((n, 1), jnp.float32),
                   jax.ShapeDtypeStruct((num_graphs, 1), jnp.float32)),
        in_specs=_vmem_specs(12),
        out_specs=(pl.BlockSpec(memory_space=pltpu.MemorySpace.VMEM),
                   pl.BlockSpec(memory_space=pltpu.MemorySpace.VMEM)),
    )(adj, x_pad, mask, pmat, w1, b1, w2, b2, wh, bh, wf, b_final)
    return xa, xc


# ----------------------------------------------------------------------------
# Pure-JAX f32 reference (unfused) for a correctness check.
# ----------------------------------------------------------------------------
def reference_forward(params, x, edge_index, batch, num_graphs):
    n = x.shape[0]
    adj = dense_mean_adj(edge_index, n)
    pmat = pool_matrix(batch, num_graphs, n)
    mask = x[:, 2:3] != 0.0

    def sage(h, wl, wr, b):
        return (adj @ h) @ wl + h @ wr + b

    h = jnp.tanh(sage(x, params["first_wl"], params["first_wr"], params["first_bl"]))
    h = jnp.tanh(sage(h, params["common_wl"], params["common_wr"], params["common_bl"]))
    xa = sage(h, params["actor_wl"], params["actor_wr"], params["actor_bl"])
    xa = jnp.where(mask, -jnp.inf, xa)
    m = jnp.max(xa, axis=0, keepdims=True)
    xa = xa - (jnp.log(jnp.sum(jnp.exp(xa - m), axis=0, keepdims=True)) + m)
    xc = sage(h, params["critic_wl"], params["critic_wr"], params["critic_bl"])
    xc = jnp.tanh(pmat @ (xc @ params["final_w"] + params["final_b"]))
    return xa, xc


if __name__ == "__main__":
    UNITS = 32
    N, E, B = 16, 48, 2

    key = jax.random.PRNGKey(0)
    k_x, k_src, k_dst, k_par = jax.random.split(key, 4)

    x = jax.random.normal(k_x, (N, 5), jnp.float32)
    # mixed do_not_flip mask: every 3rd node has x[:, 2] == 0 (flippable)
    zero_rows = (jnp.arange(N) % 3) == 0
    x = x.at[:, 2].set(jnp.where(zero_rows, 0.0, x[:, 2]))

    src = jax.random.randint(k_src, (E,), 0, N)
    dst = jax.random.randint(k_dst, (E,), 0, N)
    edge_index = jnp.stack([src, dst]).astype(jnp.int32)

    batch = (jnp.arange(N) >= N // 2).astype(jnp.int32)   # 2 graphs of 8 nodes

    params = init_params(k_par, UNITS)

    x_actor, x_critic = model_forward(params, x, edge_index, batch, B)
    jax.block_until_ready(x_actor)
    jax.block_until_ready(x_critic)

    assert x_actor.shape == (N, 1) and x_critic.shape == (B, 1)

    # correctness vs f32 reference (bf16 MXU operands -> generous tolerance)
    ref_a, ref_c = reference_forward(params, x, edge_index, batch, B)
    np.testing.assert_allclose(np.asarray(x_actor), np.asarray(ref_a),
                               rtol=1e-1, atol=1e-1)
    np.testing.assert_allclose(np.asarray(x_critic), np.asarray(ref_c),
                               rtol=1e-1, atol=1e-1)

    print("KERNEL_OK")
</pallas_src>

<mosaic_0001>
module attributes {stable_mosaic.version = 11 : i64} {
  func.func @_fused_forward_kernel(%arg0: memref<16x16xbf16, #tpu.memory_space<vmem>>, %arg1: memref<16x8xbf16, #tpu.memory_space<vmem>>, %arg2: memref<16x1xf32, #tpu.memory_space<vmem>>, %arg3: memref<2x16xf32, #tpu.memory_space<vmem>>, %arg4: memref<16x32xbf16, #tpu.memory_space<vmem>>, %arg5: memref<1x32xf32, #tpu.memory_space<vmem>>, %arg6: memref<64x32xbf16, #tpu.memory_space<vmem>>, %arg7: memref<1x32xf32, #tpu.memory_space<vmem>>, %arg8: memref<64x33xbf16, #tpu.memory_space<vmem>>, %arg9: memref<1x33xf32, #tpu.memory_space<vmem>>, %arg10: memref<32x1xf32, #tpu.memory_space<vmem>>, %arg11: memref<1x1xf32, #tpu.memory_space<vmem>>, %arg12: memref<16x1xf32, #tpu.memory_space<vmem>>, %arg13: memref<2x1xf32, #tpu.memory_space<vmem>>) attributes {dimension_semantics = [], scalar_prefetch = 0 : i64, scratch_operands = 0 : i64, tpu.core_type = #tpu.core_type<tc>} {
    %c0 = arith.constant 0 : index
    %c0_0 = arith.constant 0 : index
    %0 = vector.load %arg0[%c0, %c0_0] : memref<16x16xbf16, #tpu.memory_space<vmem>>, vector<16x16xbf16>
    %c0_1 = arith.constant 0 : index
    %c0_2 = arith.constant 0 : index
    %1 = vector.load %arg1[%c0_1, %c0_2] : memref<16x8xbf16, #tpu.memory_space<vmem>>, vector<16x8xbf16>
    %cst = arith.constant dense<0.000000e+00> : vector<16x8xf32>
    %2 = tpu.matmul %0, %1, %cst {dimension_numbers = #tpu.dot_dimension_numbers<[1], [0], [0], [1], [0, 0, 1, 1], [], []>} : vector<16x16xbf16>, vector<16x8xbf16>, vector<16x8xf32> -> vector<16x8xf32>
    %3 = arith.truncf %2 : vector<16x8xf32> to vector<16x8xbf16>
    %4 = tpu.concatenate %3, %1 in 1 : vector<16x8xbf16>, vector<16x8xbf16> -> vector<16x16xbf16>
    %c0_3 = arith.constant 0 : index
    %c0_4 = arith.constant 0 : index
    %5 = vector.load %arg4[%c0_3, %c0_4] : memref<16x32xbf16, #tpu.memory_space<vmem>>, vector<16x32xbf16>
    %cst_5 = arith.constant dense<0.000000e+00> : vector<16x32xf32>
    %6 = tpu.matmul %4, %5, %cst_5 {dimension_numbers = #tpu.dot_dimension_numbers<[1], [0], [0], [1], [0, 0, 1, 1], [], []>} : vector<16x16xbf16>, vector<16x32xbf16>, vector<16x32xf32> -> vector<16x32xf32>
    %c0_6 = arith.constant 0 : index
    %c0_7 = arith.constant 0 : index
    %7 = vector.load %arg5[%c0_6, %c0_7] : memref<1x32xf32, #tpu.memory_space<vmem>>, vector<1x32xf32>
    %8 = vector.broadcast %7 : vector<1x32xf32> to vector<16x32xf32>
    %9 = arith.addf %6, %8 : vector<16x32xf32>
    %10 = math.tanh %9 : vector<16x32xf32>
    %11 = arith.truncf %10 : vector<16x32xf32> to vector<16x32xbf16>
    %cst_8 = arith.constant dense<0.000000e+00> : vector<16x32xf32>
    %12 = tpu.matmul %0, %11, %cst_8 {dimension_numbers = #tpu.dot_dimension_numbers<[1], [0], [0], [1], [0, 0, 1, 1], [], []>} : vector<16x16xbf16>, vector<16x32xbf16>, vector<16x32xf32> -> vector<16x32xf32>
    %13 = arith.truncf %12 : vector<16x32xf32> to vector<16x32xbf16>
    %14 = tpu.concatenate %13, %11 in 1 : vector<16x32xbf16>, vector<16x32xbf16> -> vector<16x64xbf16>
    %c0_9 = arith.constant 0 : index
    %c0_10 = arith.constant 0 : index
    %15 = vector.load %arg6[%c0_9, %c0_10] : memref<64x32xbf16, #tpu.memory_space<vmem>>, vector<64x32xbf16>
    %cst_11 = arith.constant dense<0.000000e+00> : vector<16x32xf32>
    %16 = tpu.matmul %14, %15, %cst_11 {dimension_numbers = #tpu.dot_dimension_numbers<[1], [0], [0], [1], [0, 0, 1, 1], [], []>} : vector<16x64xbf16>, vector<64x32xbf16>, vector<16x32xf32> -> vector<16x32xf32>
    %c0_12 = arith.constant 0 : index
    %c0_13 = arith.constant 0 : index
    %17 = vector.load %arg7[%c0_12, %c0_13] : memref<1x32xf32, #tpu.memory_space<vmem>>, vector<1x32xf32>
    %18 = vector.broadcast %17 : vector<1x32xf32> to vector<16x32xf32>
    %19 = arith.addf %16, %18 : vector<16x32xf32>
    %20 = math.tanh %19 : vector<16x32xf32>
    %21 = arith.truncf %20 : vector<16x32xf32> to vector<16x32xbf16>
    %cst_14 = arith.constant dense<0.000000e+00> : vector<16x32xf32>
    %22 = tpu.matmul %0, %21, %cst_14 {dimension_numbers = #tpu.dot_dimension_numbers<[1], [0], [0], [1], [0, 0, 1, 1], [], []>} : vector<16x16xbf16>, vector<16x32xbf16>, vector<16x32xf32> -> vector<16x32xf32>
    %23 = arith.truncf %22 : vector<16x32xf32> to vector<16x32xbf16>
    %24 = tpu.concatenate %23, %21 in 1 : vector<16x32xbf16>, vector<16x32xbf16> -> vector<16x64xbf16>
    %c0_15 = arith.constant 0 : index
    %c0_16 = arith.constant 0 : index
    %25 = vector.load %arg8[%c0_15, %c0_16] : memref<64x33xbf16, #tpu.memory_space<vmem>>, vector<64x33xbf16>
    %cst_17 = arith.constant dense<0.000000e+00> : vector<16x33xf32>
    %26 = tpu.matmul %24, %25, %cst_17 {dimension_numbers = #tpu.dot_dimension_numbers<[1], [0], [0], [1], [0, 0, 1, 1], [], []>} : vector<16x64xbf16>, vector<64x33xbf16>, vector<16x33xf32> -> vector<16x33xf32>
    %c0_18 = arith.constant 0 : index
    %c0_19 = arith.constant 0 : index
    %27 = vector.load %arg9[%c0_18, %c0_19] : memref<1x33xf32, #tpu.memory_space<vmem>>, vector<1x33xf32>
    %28 = vector.broadcast %27 : vector<1x33xf32> to vector<16x33xf32>
    %29 = arith.addf %26, %28 : vector<16x33xf32>
    %30 = vector.extract_strided_slice %29 {offsets = [0, 0], sizes = [16, 32], strides = [1, 1]} : vector<16x33xf32> to vector<16x32xf32>
    %31 = vector.extract_strided_slice %29 {offsets = [0, 32], sizes = [16, 1], strides = [1, 1]} : vector<16x33xf32> to vector<16x1xf32>
    %c0_20 = arith.constant 0 : index
    %c0_21 = arith.constant 0 : index
    %32 = vector.load %arg2[%c0_20, %c0_21] : memref<16x1xf32, #tpu.memory_space<vmem>>, vector<16x1xf32>
    %cst_22 = arith.constant 0.000000e+00 : f32
    %33 = vector.broadcast %cst_22 : f32 to vector<16x1xf32>
    %34 = arith.cmpf ogt, %32, %33 : vector<16x1xf32>
    %cst_23 = arith.constant 0xFF800000 : f32
    %35 = vector.broadcast %cst_23 : f32 to vector<16x1xf32>
    %36 = arith.select %34, %35, %31 : vector<16x1xi1>, vector<16x1xf32>
    %cst_24 = arith.constant dense<0xFF800000> : vector<1xf32>
    %37 = vector.multi_reduction <maximumf>, %36, %cst_24 [0] : vector<16x1xf32> to vector<1xf32>
    %38 = vector.shape_cast %37 : vector<1xf32> to vector<1x1xf32>
    %39 = vector.broadcast %38 : vector<1x1xf32> to vector<16x1xf32>
    %40 = arith.subf %36, %39 : vector<16x1xf32>
    %41 = math.exp %40 : vector<16x1xf32>
    %cst_25 = arith.constant dense<0.000000e+00> : vector<1xf32>
    %42 = vector.multi_reduction <add>, %41, %cst_25 [0] : vector<16x1xf32> to vector<1xf32>
    %43 = vector.shape_cast %42 : vector<1xf32> to vector<1x1xf32>
    %44 = math.log %43 : vector<1x1xf32>
    %45 = arith.addf %44, %38 : vector<1x1xf32>
    %46 = vector.broadcast %45 : vector<1x1xf32> to vector<16x1xf32>
    %47 = arith.subf %36, %46 : vector<16x1xf32>
    %c0_26 = arith.constant 0 : index
    %c0_27 = arith.constant 0 : index
    %48 = vector.load %arg12[%c0_26, %c0_27] : memref<16x1xf32, #tpu.memory_space<vmem>>, vector<16x1xf32>
    tpu.vector_store %arg12[%c0_26, %c0_27], %47 {strides = array<i32>} : memref<16x1xf32, #tpu.memory_space<vmem>>, vector<16x1xf32>,
    %c0_28 = arith.constant 0 : index
    %c0_29 = arith.constant 0 : index
    %49 = vector.load %arg10[%c0_28, %c0_29] : memref<32x1xf32, #tpu.memory_space<vmem>>, vector<32x1xf32>
    %cst_30 = arith.constant dense<0.000000e+00> : vector<16x1xf32>
    %50 = tpu.matmul %30, %49, %cst_30 {dimension_numbers = #tpu.dot_dimension_numbers<[1], [0], [0], [1], [0, 0, 1, 1], [], []>} : vector<16x32xf32>, vector<32x1xf32>, vector<16x1xf32> -> vector<16x1xf32>
    %c0_31 = arith.constant 0 : index
    %c0_32 = arith.constant 0 : index
    %51 = vector.load %arg11[%c0_31, %c0_32] : memref<1x1xf32, #tpu.memory_space<vmem>>, vector<1x1xf32>
    %52 = vector.broadcast %51 : vector<1x1xf32> to vector<16x1xf32>
    %53 = arith.addf %50, %52 : vector<16x1xf32>
    %c0_33 = arith.constant 0 : index
    %c0_34 = arith.constant 0 : index
    %54 = vector.load %arg3[%c0_33, %c0_34] : memref<2x16xf32, #tpu.memory_space<vmem>>, vector<2x16xf32>
    %cst_35 = arith.constant dense<0.000000e+00> : vector<2x1xf32>
    %55 = tpu.matmul %54, %53, %cst_35 {dimension_numbers = #tpu.dot_dimension_numbers<[1], [0], [0], [1], [0, 0, 1, 1], [], []>} : vector<2x16xf32>, vector<16x1xf32>, vector<2x1xf32> -> vector<2x1xf32>
    %56 = math.tanh %55 : vector<2x1xf32>
    %c0_36 = arith.constant 0 : index
    %c0_37 = arith.constant 0 : index
    %57 = vector.load %arg13[%c0_36, %c0_37] : memref<2x1xf32, #tpu.memory_space<vmem>>, vector<2x1xf32>
    tpu.vector_store %arg13[%c0_36, %c0_37], %56 {strides = array<i32>} : memref<2x1xf32, #tpu.memory_space<vmem>>, vector<2x1xf32>,
    return
  }
}

</mosaic_0001>

<llo_original>
// kernel: tpu_custom_call.1
$region0: #{tpu_custom_call.1}
  #allocation0 [shape = 'u32[]', space=smem, size = 0x4, offset = 0x4, fixed_abs, tag = 'smem constant byte address 0x4 - core index']
  #allocation1 [shape = 'u32[72,128]{1,0:T(1,128)}', space=vmem, size = 0x9000, scoped, tag = 'internal scratch']
  #allocation2 [shape = 'f32[1,1]{1,0:T(1,128)S(1)}', space=vmem, size = 0x200, scoped, tag = 'scoped memory for tpu_custom_call.1']
  %s0 = inlined_call_operand.vmem [shape: bf16[16,16], index: 0, kind: input, shape index: {}]
  %s1 = inlined_call_operand.vmem [shape: bf16[16,8], index: 1, kind: input, shape index: {}]
  %s2 = inlined_call_operand.vmem [shape: f32[16,1], index: 2, kind: input, shape index: {}]
  %s3 = inlined_call_operand.vmem [shape: f32[2,16], index: 3, kind: input, shape index: {}]
  %s4 = inlined_call_operand.vmem [shape: bf16[16,32], index: 4, kind: input, shape index: {}]
  %s5 = inlined_call_operand.vmem [shape: f32[1,32], index: 5, kind: input, shape index: {}]
  %s6 = inlined_call_operand.vmem [shape: bf16[64,32], index: 6, kind: input, shape index: {}]
  %s7 = inlined_call_operand.vmem [shape: f32[1,32], index: 7, kind: input, shape index: {}]
  %s8 = inlined_call_operand.vmem [shape: bf16[64,33], index: 8, kind: input, shape index: {}]
  %s9 = inlined_call_operand.vmem [shape: f32[1,33], index: 9, kind: input, shape index: {}]
  %s10 = inlined_call_operand.vmem [shape: f32[32,1], index: 10, kind: input, shape index: {}]
  %s11 = inlined_call_operand.<no memory space> [shape: f32[1,1], index: 11, kind: input, shape index: {}]
  %s12 = inlined_call_operand.vmem [shape: f32[16,1], index: 12, kind: output, shape index: {0}]
  %s13 = inlined_call_operand.vmem [shape: f32[2,1], index: 13, kind: output, shape index: {1}]
  %14 = xla_tuple %s12, %s13
  %s15 = sld [smem:[#allocation0]]
  $region66: #{tpu_custom_call.1} parent=0
    _
  %s17 = ssub.s32 1, %s15
  %s18 = scalar_select 0, %s17, %s15
  %v19 = vstv %s11
  %20 = vst [vmem:[#allocation2] sm:$0x1] %v19
  // Predicated region
  $region2: #{tpu_custom_call.1} parent=0 // pred_check
    _
  $region3: #{tpu_custom_call.1} parent=0 // pred_check_branch
    %22 = sbr.rel (0) target = $region5
  $region4: #{tpu_custom_call.1} parent=0 // pred_region
    _
  $region5: #{tpu_custom_call.1} parent=0 // pred_fallthru
    _
  // Predicated region
  $region6: #{tpu_custom_call.1} parent=0 // pred_check
    _
  $region7: #{tpu_custom_call.1} parent=0 // pred_check_branch
    %24 = sbr.rel (0) target = $region9
  $region8: #{tpu_custom_call.1} parent=0 // pred_region
    _
  $region9: #{tpu_custom_call.1} parent=0 // pred_fallthru
    _
  // Predicated region
  $region10: #{tpu_custom_call.1} parent=0 // pred_check
    _
  $region11: #{tpu_custom_call.1} parent=0 // pred_check_branch
    %26 = sbr.rel (0) target = $region13
  $region12: #{tpu_custom_call.1} parent=0 // pred_region
    _
  $region13: #{tpu_custom_call.1} parent=0 // pred_fallthru
    _
  // Predicated region
  $region14: #{tpu_custom_call.1} parent=0 // pred_check
    _
  $region15: #{tpu_custom_call.1} parent=0 // pred_check_branch
    %28 = sbr.rel (0) target = $region17
  $region16: #{tpu_custom_call.1} parent=0 // pred_region
    _
  $region17: #{tpu_custom_call.1} parent=0 // pred_fallthru
    _
  // Predicated region
  $region18: #{tpu_custom_call.1} parent=0 // pred_check
    _
  $region19: #{tpu_custom_call.1} parent=0 // pred_check_branch
    %30 = sbr.rel (0) target = $region21
  $region20: #{tpu_custom_call.1} parent=0 // pred_region
    _
  $region21: #{tpu_custom_call.1} parent=0 // pred_fallthru
    _
  // Predicated region
  $region22: #{tpu_custom_call.1} parent=0 // pred_check
    _
  $region23: #{tpu_custom_call.1} parent=0 // pred_check_branch
    %32 = sbr.rel (0) target = $region25
  $region24: #{tpu_custom_call.1} parent=0 // pred_region
    _
  $region25: #{tpu_custom_call.1} parent=0 // pred_fallthru
    _
  // Predicated region
  $region26: #{tpu_custom_call.1} parent=0 // pred_check
    _
  $region27: #{tpu_custom_call.1} parent=0 // pred_check_branch
    %34 = sbr.rel (0) target = $region29
  $region28: #{tpu_custom_call.1} parent=0 // pred_region
    _
  $region29: #{tpu_custom_call.1} parent=0 // pred_fallthru
    _
  // Predicated region
  $region30: #{tpu_custom_call.1} parent=0 // pred_check
    _
  $region31: #{tpu_custom_call.1} parent=0 // pred_check_branch
    %36 = sbr.rel (0) target = $region33
  $region32: #{tpu_custom_call.1} parent=0 // pred_region
    _
  $region33: #{tpu_custom_call.1} parent=0 // pred_fallthru
    _
  // Predicated region
  $region34: #{tpu_custom_call.1} parent=0 // pred_check
    _
  $region35: #{tpu_custom_call.1} parent=0 // pred_check_branch
    %38 = sbr.rel (0) target = $region37
  $region36: #{tpu_custom_call.1} parent=0 // pred_region
    _
  $region37: #{tpu_custom_call.1} parent=0 // pred_fallthru
    _
  // Predicated region
  $region38: #{tpu_custom_call.1} parent=0 // pred_check
    _
  $region39: #{tpu_custom_call.1} parent=0 // pred_check_branch
    %40 = sbr.rel (0) target = $region41
  $region40: #{tpu_custom_call.1} parent=0 // pred_region
    _
  $region41: #{tpu_custom_call.1} parent=0 // pred_fallthru
    _
  // Predicated region
  $region42: #{tpu_custom_call.1} parent=0 // pred_check
    _
  $region43: #{tpu_custom_call.1} parent=0 // pred_check_branch
    %42 = sbr.rel (0) target = $region45
  $region44: #{tpu_custom_call.1} parent=0 // pred_region
    _
  $region45: #{tpu_custom_call.1} parent=0 // pred_fallthru
    _
  // Predicated region
  $region46: #{tpu_custom_call.1} parent=0 // pred_check
    _
  $region47: #{tpu_custom_call.1} parent=0 // pred_check_branch
    %44 = sbr.rel (0) target = $region49
  $region48: #{tpu_custom_call.1} parent=0 // pred_region
    _
  $region49: #{tpu_custom_call.1} parent=0 // pred_fallthru
    _
  %v46 = vld [vmem:[%s0] sm:$0xf]
  %v47 = vld [vmem:[%s0 + $0x4] sm:$0xf]
  %v48 = vld [vmem:[%s1] sm:$0xf]
  %v49 = vld [vmem:[%s1 + $0x4] sm:$0xf]
  %v52 = vunpack.c.l.b16 %v46
  %v53 = vunpack.c.l.b16 %v47
  %v54 = vpack.c.b16 %v53, %v52
  %v57 = vunpack.c.l.b16 %v48
  %v58 = vunpack.c.l.b16 %v49
  %v59 = vpack.c.b16 %v58, %v57
  %vm61 = vcmask 130048
  %v63 = vsel %vm61, %v54, 0
  %65 = vmatpush.bf16.msra.mxu0 0
  %66 = vmatpush.bf16.msra.mxu0 0
  %67 = vmatpush.bf16.msra.mxu0 0
  %68 = vmatpush.bf16.msra.mxu0 0
  %69 = vmatpush.bf16.msra.mxu0 0
  %70 = vmatpush.bf16.msra.mxu0 0
  %71 = vmatpush.bf16.msra.mxu0 0
  %72 = vmatpush.bf16.msra.mxu0 %v59
  %73 = vmatmul.bf16.gmra.mxu0 %v63
  %v74 = vpop.f32.mrf.mxu0
  %v75 = vadd.f32 0.0, %v74
  %v76 = vpop.f32.mrf.mxu0
  %v77 = vadd.f32 0.0, %v76
  %78 = vdwg.mxu0
  %v79 = vpack.c.bf16 %v75, %v75
  %v80 = vpack.c.bf16 %v77, %v77
  %v83 = vunpack.c.l.b16 %v79
  %v84 = vunpack.c.l.b16 %v80
  %v85 = vpack.c.b16 %v84, %v83
  %86 = vrot.lane.b32.xlu0 %v59, 8
  %v87 = vpop.permute.xlu0 %86
  %vm88 = vcmask 64512
  %v91 = vsel %vm88, %v85, %v87
  %v92 = vld [vmem:[%s4] sm:$0xf]
  %v93 = vld [vmem:[%s4 + $0x4] sm:$0xf]
  %v94 = vld [vmem:[%s5] sm:$0x1]
  %v96 = vperm.slane %v94, 0
  %v100 = vunpack.c.l.b16 %v92
  %v101 = vunpack.c.l.b16 %v93
  %v102 = vpack.c.b16 %v101, %v100
  %v104 = vsel %vm61, %v91, 0
  %106 = vmatpush.bf16.msra.mxu0 0
  %107 = vmatpush.bf16.msra.mxu0 0
  %108 = vmatpush.bf16.msra.mxu0 0
  %109 = vmatpush.bf16.msra.mxu0 0
  %110 = vmatpush.bf16.msra.mxu0 0
  %111 = vmatpush.bf16.msra.mxu0 0
  %112 = vmatpush.bf16.msra.mxu0 0
  %113 = vmatpush.bf16.msra.mxu0 %v102
  %114 = vmatmul.bf16.gmra.mxu0 %v104
  %v115 = vpop.f32.mrf.mxu0
  %v116 = vadd.f32 %v96, %v115
  %v117 = vpop.f32.mrf.mxu0
  %v118 = vadd.f32 %v96, %v117
  %119 = vdwg.mxu0
  %v120 = vtanh.pop %v116
  %v121 = vtanh.pop %v118
  %v122 = vpack.c.bf16 %v120, %v120
  %v123 = vpack.c.bf16 %v121, %v121
  %v126 = vunpack.c.l.b16 %v122
  %v127 = vunpack.c.l.b16 %v123
  %v128 = vpack.c.b16 %v127, %v126
  %130 = vmatpush.bf16.msra.mxu0 0
  %131 = vmatpush.bf16.msra.mxu0 0
  %132 = vmatpush.bf16.msra.mxu0 0
  %133 = vmatpush.bf16.msra.mxu0 0
  %134 = vmatpush.bf16.msra.mxu0 0
  %135 = vmatpush.bf16.msra.mxu0 0
  %136 = vmatpush.bf16.msra.mxu0 0
  %137 = vmatpush.bf16.msra.mxu0 %v128
  %138 = vmatmul.bf16.gmra.mxu0 %v63
  %v139 = vpop.f32.mrf.mxu0
  %v140 = vadd.f32 0.0, %v139
  %v141 = vpop.f32.mrf.mxu0
  %v142 = vadd.f32 0.0, %v141
  %143 = vdwg.mxu0
  %v144 = vpack.c.bf16 %v140, %v140
  %v145 = vpack.c.bf16 %v142, %v142
  %v148 = vunpack.c.l.b16 %v144
  %v149 = vunpack.c.l.b16 %v145
  %v150 = vpack.c.b16 %v149, %v148
  %151 = vrot.lane.b32.xlu0 %v128, 32
  %v152 = vpop.permute.xlu0 %151
  %vm153 = vcmask 261120
  %v156 = vsel %vm153, %v150, %v152
  %v157 = vld [vmem:[%s6] sm:$0xf]
  %v158 = vld [vmem:[%s6 + $0x4] sm:$0xf]
  %v159 = vld [vmem:[%s6 + $0x8] sm:$0xf]
  %v160 = vld [vmem:[%s6 + $0xc] sm:$0xf]
  %v161 = vld [vmem:[%s6 + $0x10] sm:$0xf]
  %v162 = vld [vmem:[%s6 + $0x14] sm:$0xf]
  %v163 = vld [vmem:[%s6 + $0x18] sm:$0xf]
  %v164 = vld [vmem:[%s6 + $0x1c] sm:$0xf]
  %v165 = vld [vmem:[%s7] sm:$0x1]
  %v167 = vperm.slane %v165, 0
  %v177 = vunpack.c.l.b16 %v157
  %v178 = vunpack.c.l.b16 %v158
  %v179 = vunpack.c.l.b16 %v159
  %v180 = vunpack.c.l.b16 %v160
  %v181 = vunpack.c.l.b16 %v161
  %v182 = vunpack.c.l.b16 %v162
  %v183 = vunpack.c.l.b16 %v163
  %v184 = vunpack.c.l.b16 %v164
  %v185 = vpack.c.b16 %v178, %v177
  %v186 = vpack.c.b16 %v180, %v179
  %v187 = vpack.c.b16 %v182, %v181
  %v188 = vpack.c.b16 %v184, %v183
  %vm193 = vcmask 523264
  %v194 = vsel %vm193, %v156, 0
  %196 = vmatpush.bf16.msra.mxu0 0
  %197 = vmatpush.bf16.msra.mxu0 0
  %198 = vmatpush.bf16.msra.mxu0 0
  %199 = vmatpush.bf16.msra.mxu0 0
  %200 = vmatpush.bf16.msra.mxu0 %v188
  %201 = vmatpush.bf16.msra.mxu0 %v187
  %202 = vmatpush.bf16.msra.mxu0 %v186
  %203 = vmatpush.bf16.msra.mxu0 %v185
  %204 = vmatmul.bf16.gmra.mxu0 %v194
  %v205 = vpop.f32.mrf.mxu0
  %v206 = vadd.f32 %v167, %v205
  %v207 = vpop.f32.mrf.mxu0
  %v208 = vadd.f32 %v167, %v207
  %209 = vdwg.mxu0
  %v210 = vtanh.pop %v206
  %v211 = vtanh.pop %v208
  %v212 = vpack.c.bf16 %v210, %v210
  %v213 = vpack.c.bf16 %v211, %v211
  %v216 = vunpack.c.l.b16 %v212
  %v217 = vunpack.c.l.b16 %v213
  %v218 = vpack.c.b16 %v217, %v216
  %220 = vmatpush.bf16.msra.mxu0 0
  %221 = vmatpush.bf16.msra.mxu0 0
  %222 = vmatpush.bf16.msra.mxu0 0
  %223 = vmatpush.bf16.msra.mxu0 0
  %224 = vmatpush.bf16.msra.mxu0 0
  %225 = vmatpush.bf16.msra.mxu0 0
  %226 = vmatpush.bf16.msra.mxu0 0
  %227 = vmatpush.bf16.msra.mxu0 %v218
  %228 = vmatmul.bf16.gmra.mxu0 %v63
  %v229 = vpop.f32.mrf.mxu0
  %v230 = vadd.f32 0.0, %v229
  %v231 = vpop.f32.mrf.mxu0
  %v232 = vadd.f32 0.0, %v231
  %233 = vdwg.mxu0
  %v234 = vpack.c.bf16 %v230, %v230
  %v235 = vpack.c.bf16 %v232, %v232
  %v238 = vunpack.c.l.b16 %v234
  %v239 = vunpack.c.l.b16 %v235
  %v240 = vpack.c.b16 %v239, %v238
  %241 = vrot.lane.b32.xlu0 %v218, 32
  %v242 = vpop.permute.xlu0 %241
  %v245 = vsel %vm153, %v240, %v242
  %v246 = vld [vmem:[%s8] sm:$0xf]
  %v247 = vld [vmem:[%s8 + $0x4] sm:$0xf]
  %v248 = vld [vmem:[%s8 + $0x8] sm:$0xf]
  %v249 = vld [vmem:[%s8 + $0xc] sm:$0xf]
  %v250 = vld [vmem:[%s8 + $0x10] sm:$0xf]
  %v251 = vld [vmem:[%s8 + $0x14] sm:$0xf]
  %v252 = vld [vmem:[%s8 + $0x18] sm:$0xf]
  %v253 = vld [vmem:[%s8 + $0x1c] sm:$0xf]
  %v254 = vld [vmem:[%s9] sm:$0x1]
  %v256 = vperm.slane %v254, 0
  %v266 = vunpack.c.l.b16 %v246
  %v267 = vunpack.c.l.b16 %v247
  %v268 = vunpack.c.l.b16 %v248
  %v269 = vunpack.c.l.b16 %v249
  %v270 = vunpack.c.l.b16 %v250
  %v271 = vunpack.c.l.b16 %v251
  %v272 = vunpack.c.l.b16 %v252
  %v273 = vunpack.c.l.b16 %v253
  %v274 = vpack.c.b16 %v267, %v266
  %v275 = vpack.c.b16 %v269, %v268
  %v276 = vpack.c.b16 %v271, %v270
  %v277 = vpack.c.b16 %v273, %v272
  %v282 = vsel %vm193, %v245, 0
  %284 = vmatpush.bf16.msra.mxu0 0
  %285 = vmatpush.bf16.msra.mxu0 0
  %286 = vmatpush.bf16.msra.mxu0 0
  %287 = vmatpush.bf16.msra.mxu0 0
  %288 = vmatpush.bf16.msra.mxu0 %v277
  %289 = vmatpush.bf16.msra.mxu0 %v276
  %290 = vmatpush.bf16.msra.mxu0 %v275
  %291 = vmatpush.bf16.msra.mxu0 %v274
  %292 = vmatmul.bf16.gmra.mxu0 %v282
  %v293 = vpop.f32.mrf.mxu0
  %v294 = vadd.f32 %v256, %v293
  %v295 = vpop.f32.mrf.mxu0
  %v296 = vadd.f32 %v256, %v295
  %297 = vdwg.mxu0
  %v298 = vld [vmem:[%s2] sm:$0xff]
  %v299 = vld [vmem:[%s2 + $0x8] sm:$0xff]
  %vm300 = vcmp.gt.f32.partialorder %v298, 0.0
  %vm301 = vcmp.gt.f32.partialorder %v299, 0.0
  %304 = vrot.lane.b32.xlu0 %v294, 96
  %v305 = vpop.permute.xlu0 %304
  %306 = vrot.lane.b32.xlu0 %v296, 96
  %v307 = vpop.permute.xlu0 %306
  %v310 = vsel %vm300, -inf, %v305
  %v311 = vsel %vm301, -inf, %v307
  %vm312 = vcmask 7168
  %v313 = vsel %vm312, %v310, -inf
  %v314 = vsel %vm312, %v311, -inf
  %v315 = vmax.f32 %v313, %v314
  %v316 = vrot.slane %v315, 4
  %v317 = vmax.f32 %v315, %v316
  %v318 = vrot.slane %v317, 2
  %v319 = vmax.f32 %v317, %v318
  %v320 = vrot.slane %v319, 1
  %v321 = vmax.f32 %v319, %v320
  %v322 = vsub.f32 %v310, %v321
  %v323 = vsub.f32 %v311, %v321
  %v324 = vmul.f32 %v322, 1.442695
  %v325 = vpow.pop %v324
  %v326 = vmul.f32 %v323, 1.442695
  %v327 = vpow.pop %v326
  %v328 = vsel %vm312, %v325, 0.0
  %v329 = vsel %vm312, %v327, 0.0
  %v330 = vadd.f32 %v328, %v329
  %v331 = vrot.slane %v330, 4
  %v332 = vadd.f32 %v330, %v331
  %v333 = vrot.slane %v332, 2
  %v334 = vadd.f32 %v332, %v333
  %v335 = vrot.slane %v334, 1
  %v336 = vadd.f32 %v334, %v335
  %v337 = vlog2.pop %v336
  %v338 = vmul.f32 %v337, 0.6931472
  %v339 = vadd.f32 %v338, %v321
  %v340 = vsub.f32 %v310, %v339
  %v341 = vsub.f32 %v311, %v339
  %342 = vst.msk [vmem:[%s12] sm:$0xff] %vm312, %v340
  %343 = vst.msk [vmem:[%s12 + $0x8] sm:$0xff] %vm312, %v341
  %v344 = vld [vmem:[%s10] sm:$0xff]
  %v345 = vld [vmem:[%s10 + $0x8] sm:$0xff]
  %v346 = vld [vmem:[%s10 + $0x10] sm:$0xff]
  %v347 = vld [vmem:[%s10 + $0x18] sm:$0xff]
  %v348 = vld [vmem:[#allocation2] sm:$0x1]
  %v350 = vperm.slane %v348, 0
  %v352 = vsel %vm153, %v294, 0
  %v354 = vsel %vm153, %v296, 0
  %356 = vmatpush.msra.mxu0 0.0
  %357 = vmatpush.msra.mxu0 0.0
  %358 = vmatpush.msra.mxu0 0.0
  %359 = vmatpush.msra.mxu0 0.0
  %360 = vmatpush.msra.mxu0 0.0
  %361 = vmatpush.msra.mxu0 0.0
  %362 = vmatpush.msra.mxu0 0.0
  %363 = vmatpush.msra.mxu0 0.0
  %364 = vmatpush.msra.mxu0 0.0
  %365 = vmatpush.msra.mxu0 0.0
  %366 = vmatpush.msra.mxu0 0.0
  %367 = vmatpush.msra.mxu0 0.0
  %368 = vmatpush.msra.mxu0 %v347
  %369 = vmatpush.msra.mxu0 %v346
  %370 = vmatpush.msra.mxu0 %v345
  %371 = vmatpush.msra.mxu0 %v344
  %372 = vmatmul.f32.gmra.mxu0 %v352
  %v373 = vpop.f32.mrf.mxu0
  %v374 = vadd.f32 %v350, %v373
  %375 = vmatmul.f32.gmra.mxu0 %v354
  %v376 = vpop.f32.mrf.mxu0
  %v377 = vadd.f32 %v350, %v376
  %378 = vdwg.mxu0
  %v379 = vld [vmem:[%s3] sm:$0x3]
  %v381 = vsel %vm61, %v379, 0
  %383 = vmatpush.msra.mxu0 0.0
  %384 = vmatpush.msra.mxu0 0.0
  %385 = vmatpush.msra.mxu0 0.0
  %386 = vmatpush.msra.mxu0 0.0
  %387 = vmatpush.msra.mxu0 0.0
  %388 = vmatpush.msra.mxu0 0.0
  %389 = vmatpush.msra.mxu0 0.0
  %390 = vmatpush.msra.mxu0 0.0
  %391 = vmatpush.msra.mxu0 0.0
  %392 = vmatpush.msra.mxu0 0.0
  %393 = vmatpush.msra.mxu0 0.0
  %394 = vmatpush.msra.mxu0 0.0
  %395 = vmatpush.msra.mxu0 0.0
  %396 = vmatpush.msra.mxu0 0.0
  %397 = vmatpush.msra.mxu0 %v377
  %398 = vmatpush.msra.mxu0 %v374
  %399 = vmatmul.f32.gmra.mxu0 %v381
  %v400 = vpop.f32.mrf.mxu0
  %v401 = vadd.f32 0.0, %v400
  %402 = vdwg.mxu0
  %v403 = vtanh.pop %v401
  %vm404 = vcmask 1024
  %405 = vst.msk [vmem:[%s13] sm:$0x3] %vm404, %v403
  // Predicated region
  $region50: #{tpu_custom_call.1} parent=0 // pred_check
    _
  $region51: #{tpu_custom_call.1} parent=0 // pred_check_branch
    %407 = sbr.rel (0) target = $region53
  $region52: #{tpu_custom_call.1} parent=0 // pred_region
    _
  $region53: #{tpu_custom_call.1} parent=0 // pred_fallthru
    _
  // Predicated region
  $region54: #{tpu_custom_call.1} parent=0 // pred_check
    _
  $region55: #{tpu_custom_call.1} parent=0 // pred_check_branch
    %409 = sbr.rel (0) target = $region57
  $region56: #{tpu_custom_call.1} parent=0 // pred_region
    _
  $region57: #{tpu_custom_call.1} parent=0 // pred_fallthru
    _
  // Predicated region
  $region58: #{tpu_custom_call.1} parent=0 // pred_check
    _
  $region59: #{tpu_custom_call.1} parent=0 // pred_check_branch
    %411 = sbr.rel (0) target = $region61
  $region60: #{tpu_custom_call.1} parent=0 // pred_region
    _
  $region61: #{tpu_custom_call.1} parent=0 // pred_fallthru
    _
  // Predicated region
  $region62: #{tpu_custom_call.1} parent=0 // pred_check
    _
  $region63: #{tpu_custom_call.1} parent=0 // pred_check_branch
    %413 = sbr.rel (0) target = $region65
  $region64: #{tpu_custom_call.1} parent=0 // pred_region
    _
  $region65: #{tpu_custom_call.1} parent=0 // pred_fallthru
    _

</llo_original>
